<compile_context>
chip_gen: v7x
topology: tpu7x:2x2x1
jax: 0.10.0
libtpu: 0.0.40
codegen_flags: <defaults>
</compile_context>

<pallas_src>
import functools

import jax
import jax.numpy as jnp
from jax import lax
from jax.experimental import pallas as pl
from jax.experimental.pallas import tpu as pltpu


# ---------------------------------------------------------------------------
# In-kernel helpers
# ---------------------------------------------------------------------------

def _onehot_rows(idx_col, table_f32, n_rows, tm):
    """Exact row gather via one-hot @ table on the (otherwise idle) MXU."""
    iota = lax.broadcasted_iota(jnp.int32, (tm, n_rows), 1)
    oh = (idx_col == iota).astype(jnp.float32)
    return jnp.dot(oh, table_f32, preferred_element_type=jnp.float32,
                   precision=lax.Precision.HIGHEST)


def _pos_plus_type(pos_ref, type_ref, tt_ref, pid_ref, *, tm, pos_onehot,
                   tt_onehot, n_pos, n_types):
    """Position + token-type embedding sum for the current (TM, H) block."""
    if pos_onehot:
        # Explicit position ids: position table is VMEM resident, gather rows
        # in-kernel (no second DMA gather).
        rest = _onehot_rows(pid_ref[...], pos_ref[...].astype(jnp.float32),
                            n_pos, tm)
    else:
        # Default arange positions: contiguous slice of the table.
        rest = pos_ref[...].astype(jnp.float32)

    type_tab = type_ref[...].astype(jnp.float32)
    if tt_onehot:
        if n_types <= 4:
            tt = tt_ref[...]                               # (TM, 1) int32
            add = jnp.where(tt == 0, type_tab[0:1, :], 0.0)
            for t in range(1, n_types):
                add = add + jnp.where(tt == t, type_tab[t:t + 1, :], 0.0)
            rest = rest + add
        else:
            rest = rest + _onehot_rows(tt_ref[...], type_tab, n_types, tm)
    else:
        # token_type_ids == zeros -> just add row 0 (no select loop).
        rest = rest + type_tab[0:1, :]
    return rest


def _layer_norm(x, g_ref, b_ref, eps):
    mean = jnp.mean(x, axis=-1, keepdims=True)
    xc = x - mean
    var = jnp.mean(xc * xc, axis=-1, keepdims=True)
    y = xc * lax.rsqrt(var + eps)
    return y * g_ref[...].astype(jnp.float32) + b_ref[...].astype(jnp.float32)


# ---------------------------------------------------------------------------
# Kernels
# ---------------------------------------------------------------------------

def _emb_kernel_resident(*refs, eps, tm, vocab, n_pos, n_types, pos_onehot,
                         tt_onehot):
    """All tables VMEM resident; word rows gathered via one-hot MXU matmul."""
    it = iter(refs)
    ids_ref = next(it)
    tt_ref = next(it) if tt_onehot else None
    pid_ref = next(it) if pos_onehot else None
    word_ref = next(it)
    pos_ref = next(it)
    type_ref = next(it)
    g_ref = next(it)
    b_ref = next(it)
    out_ref = next(it)

    word_rows = _onehot_rows(ids_ref[...], word_ref[...].astype(jnp.float32),
                             vocab, tm)
    rest = _pos_plus_type(pos_ref, type_ref, tt_ref, pid_ref, tm=tm,
                          pos_onehot=pos_onehot, tt_onehot=tt_onehot,
                          n_pos=n_pos, n_types=n_types)
    x = word_rows + rest
    out_ref[...] = _layer_norm(x, g_ref, b_ref, eps).astype(out_ref.dtype)


def _emb_kernel_hbm(ids_sm, *refs, eps, tm, n_pos, n_types, pos_onehot,
                    tt_onehot):
    """Word table in HBM; cross-step prefetched double-buffered row gather."""
    it = iter(refs)
    tt_ref = next(it) if tt_onehot else None
    pid_ref = next(it) if pos_onehot else None
    pos_ref = next(it)
    type_ref = next(it)
    g_ref = next(it)
    b_ref = next(it)
    word_hbm = next(it)
    out_ref = next(it)
    wrows = next(it)        # VMEM (2, TM, H) double buffer
    sems = next(it)         # DMA semaphores (2,), one per slot

    i = pl.program_id(0)
    nblk = pl.num_programs(0)
    slot = i % 2

    def issue_block(blk, slot_idx):
        base = blk * tm
        # Fully unrolled descriptor issue: SMEM index loads + starts
        # co-schedule in one window; all TM copies land on one semaphore.
        for t in range(tm):
            pltpu.make_async_copy(
                word_hbm.at[pl.ds(ids_sm[base + t], 1)],
                wrows.at[slot_idx, pl.ds(t, 1)],
                sems.at[slot_idx],
            ).start()

    # Prime slot 0 for the very first block (nothing to hide it behind).
    @pl.when(i == 0)
    def _():
        issue_block(0, 0)

    # Prefetch the NEXT block's rows into the other slot BEFORE draining ours,
    # so the gather latency hides behind this step's VPU/LN work.
    @pl.when(i + 1 < nblk)
    def _():
        issue_block(i + 1, 1 - slot)

    # Work that does not depend on the gathered rows (overlaps in-flight DMAs).
    rest = _pos_plus_type(pos_ref, type_ref, tt_ref, pid_ref, tm=tm,
                          pos_onehot=pos_onehot, tt_onehot=tt_onehot,
                          n_pos=n_pos, n_types=n_types)

    # Single batched drain: all copies on this slot are identical (1, H) rows,
    # so one wait whose descriptor covers the whole (TM, H) buffer accounts
    # for all of them (no TM serialized waits).
    pltpu.make_async_copy(
        word_hbm.at[pl.ds(0, tm)],
        wrows.at[slot],
        sems.at[slot],
    ).wait()

    x = rest + wrows[slot].astype(jnp.float32)
    out_ref[...] = _layer_norm(x, g_ref, b_ref, eps).astype(out_ref.dtype)


# ---------------------------------------------------------------------------
# Wrapper
# ---------------------------------------------------------------------------

def _pick_tm(seq_len, hidden, *, itemsize=4, cap=512):
    """Largest multiple of 8 dividing seq_len, capped so (TM, H) f32 blocks stay
    ~<=2 MiB (comfortable on v7x's 64 MiB VMEM as well)."""
    budget_rows = (2 * 1024 * 1024) // max(1, hidden * itemsize)
    cap = max(8, min(cap, (budget_rows // 8) * 8))
    best = None
    t = 8
    while t <= min(seq_len, cap):
        if seq_len % t == 0:
            best = t
        t += 8
    if best is None:
        # TODO(synk): sequences not a multiple of 8 would need padding + masked stores.
        raise ValueError("seq_length must be a multiple of 8 for this kernel")
    return best


def quasar_embeddings(input_ids, word_emb, pos_emb, type_emb, gamma, beta, *,
                      token_type_ids=None, position_ids=None, eps=1e-12,
                      block_tokens=None, out_dtype=None,
                      word_table_resident=None):
    """Pallas implementation of QuasarEmbeddings.forward (inference)."""
    B, S = input_ids.shape
    V, H = word_emb.shape
    P = pos_emb.shape[0]
    T = type_emb.shape[0]
    n_tok = B * S
    out_dtype = out_dtype if out_dtype is not None else word_emb.dtype

    pos_onehot = position_ids is not None
    tt_onehot = token_type_ids is not None

    if word_table_resident is None:
        # Small-table fast path: whole word table resident in VMEM, gathered
        # with a one-hot MXU matmul (no per-row DMAs at all).
        word_table_resident = (V <= 1024) and (
            V * H * word_emb.dtype.itemsize <= 8 * 1024 * 1024)

    if block_tokens is not None:
        tm = block_tokens
    else:
        # HBM path: cap TM so per-slot in-flight row DMAs stay bounded.
        tm = _pick_tm(S, H, cap=512 if word_table_resident else 256)
    assert S % tm == 0 and tm % 8 == 0
    s_blocks = S // tm
    n_blocks = n_tok // tm

    ids2 = input_ids.reshape(n_tok, 1).astype(jnp.int32)
    ids_flat = input_ids.reshape(n_tok).astype(jnp.int32)
    gamma2 = gamma.reshape(1, H)
    beta2 = beta.reshape(1, H)
    if tt_onehot:
        tt2 = token_type_ids.reshape(n_tok, 1).astype(jnp.int32)
    if pos_onehot:
        pid2 = jnp.broadcast_to(position_ids, (B, S)).reshape(n_tok, 1).astype(jnp.int32)

    elt = 4
    cost = pl.CostEstimate(
        flops=int(12 * n_tok * H),
        transcendentals=int(n_tok),
        bytes_accessed=int(elt * (4 * n_tok * H + (V + P + T + 2) * H)
                           + 12 * n_tok),
    )

    if word_table_resident:
        in_specs = [pl.BlockSpec((tm, 1), lambda i: (i, 0))]           # input ids
        args = [ids2]
        if tt_onehot:
            in_specs.append(pl.BlockSpec((tm, 1), lambda i: (i, 0)))   # token type ids
            args.append(tt2)
        if pos_onehot:
            in_specs.append(pl.BlockSpec((tm, 1), lambda i: (i, 0)))   # position ids
            args.append(pid2)
        in_specs.append(pl.BlockSpec((V, H), lambda i: (0, 0)))        # word table (resident)
        args.append(word_emb)
        if pos_onehot:
            in_specs.append(pl.BlockSpec((P, H), lambda i: (0, 0)))    # pos table (resident)
        else:
            in_specs.append(pl.BlockSpec((tm, H), lambda i: (i % s_blocks, 0)))  # pos slice
        args.append(pos_emb)
        in_specs.append(pl.BlockSpec((T, H), lambda i: (0, 0)))        # type table (resident)
        args.append(type_emb)
        in_specs.append(pl.BlockSpec((1, H), lambda i: (0, 0)))        # gamma
        args.append(gamma2)
        in_specs.append(pl.BlockSpec((1, H), lambda i: (0, 0)))        # beta
        args.append(beta2)

        kernel = functools.partial(_emb_kernel_resident, eps=eps, tm=tm, vocab=V,
                                   n_pos=P, n_types=T,
                                   pos_onehot=pos_onehot, tt_onehot=tt_onehot)
        grid_spec = pltpu.PrefetchScalarGridSpec(
            num_scalar_prefetch=0, grid=(n_blocks,),
            in_specs=in_specs,
            out_specs=pl.BlockSpec((tm, H), lambda i: (i, 0)),
            scratch_shapes=[])
        dim_sem = (pltpu.PARALLEL,)   # independent blocks -> v7x 2-TC split
        scratch_bytes = 0
    else:
        in_specs = []
        args = [ids_flat]                                              # scalar prefetch -> SMEM
        if tt_onehot:
            in_specs.append(pl.BlockSpec((tm, 1), lambda i, ids: (i, 0)))
            args.append(tt2)
        if pos_onehot:
            in_specs.append(pl.BlockSpec((tm, 1), lambda i, ids: (i, 0)))
            args.append(pid2)
        if pos_onehot:
            in_specs.append(pl.BlockSpec((P, H), lambda i, ids: (0, 0)))
        else:
            in_specs.append(pl.BlockSpec((tm, H), lambda i, ids: (i % s_blocks, 0)))
        args.append(pos_emb)
        in_specs.append(pl.BlockSpec((T, H), lambda i, ids: (0, 0)))
        args.append(type_emb)
        in_specs.append(pl.BlockSpec((1, H), lambda i, ids: (0, 0)))
        args.append(gamma2)
        in_specs.append(pl.BlockSpec((1, H), lambda i, ids: (0, 0)))
        args.append(beta2)
        in_specs.append(pl.BlockSpec(memory_space=pl.ANY))             # word table (HBM)
        args.append(word_emb)

        kernel = functools.partial(_emb_kernel_hbm, eps=eps, tm=tm,
                                   n_pos=P, n_types=T,
                                   pos_onehot=pos_onehot, tt_onehot=tt_onehot)
        grid_spec = pltpu.PrefetchScalarGridSpec(
            num_scalar_prefetch=1, grid=(n_blocks,),
            in_specs=in_specs,
            out_specs=pl.BlockSpec((tm, H), lambda i, ids: (i, 0)),
            scratch_shapes=[pltpu.VMEM((2, tm, H), word_emb.dtype),
                            pltpu.SemaphoreType.DMA((2,))])
        # Cross-step prefetch carries state across iterations -> sequential.
        dim_sem = (pltpu.ARBITRARY,)
        scratch_bytes = 2 * tm * H * word_emb.dtype.itemsize

    # Rough VMEM estimate; only raise the scoped limit when actually needed.
    resident_bytes = (T + 2) * H * elt
    if word_table_resident:
        resident_bytes += V * H * word_emb.dtype.itemsize
    if pos_onehot:
        resident_bytes += P * H * pos_emb.dtype.itemsize
    block_bytes = 6 * tm * H * elt            # double-buffered pos/out-ish blocks
    est = resident_bytes + block_bytes + scratch_bytes
    vmem_limit = None
    if est > 12 * 1024 * 1024:
        vmem_limit = min(2 * est + (4 << 20), 48 << 20)

    out_flat = pl.pallas_call(
        kernel,
        out_shape=jax.ShapeDtypeStruct((n_tok, H), out_dtype),
        grid_spec=grid_spec,
        compiler_params=pltpu.CompilerParams(
            dimension_semantics=dim_sem,
            vmem_limit_bytes=vmem_limit),
        cost_estimate=cost,
    )(*args)

    # TODO(synk): dropout is identity here (eval mode); a training-mode kernel
    # would use pltpu.prng_seed / pltpu.stateful_bernoulli for the mask.
    return out_flat.reshape(B, S, H)


# ---------------------------------------------------------------------------
# Pure-JAX reference & self-test
# ---------------------------------------------------------------------------

def _reference(input_ids, word_emb, pos_emb, type_emb, gamma, beta, eps,
               token_type_ids=None, position_ids=None):
    B, S = input_ids.shape
    if position_ids is None:
        position_ids = jnp.broadcast_to(jnp.arange(S)[None, :], (B, S))
    if token_type_ids is None:
        token_type_ids = jnp.zeros((B, S), dtype=jnp.int32)
    x = word_emb[input_ids] + pos_emb[position_ids] + type_emb[token_type_ids]
    mean = jnp.mean(x, axis=-1, keepdims=True)
    var = jnp.mean((x - mean) ** 2, axis=-1, keepdims=True)
    return (x - mean) * lax.rsqrt(var + eps) * gamma + beta


if __name__ == "__main__":
    vocab_size = 32
    max_position_embeddings = 16
    type_vocab_size = 2
    hidden_size = 128            # lane-aligned
    pad_token_id = 0
    layer_norm_eps = 1e-12
    B, S = 2, 8

    key = jax.random.PRNGKey(0)
    k_w, k_p, k_t, k_ids, k_tt, k_pos = jax.random.split(key, 6)

    word_emb = 0.02 * jax.random.normal(k_w, (vocab_size, hidden_size), jnp.float32)
    word_emb = word_emb.at[pad_token_id].set(0.0)   # nn.Embedding(padding_idx=...)
    pos_emb = 0.02 * jax.random.normal(k_p, (max_position_embeddings, hidden_size), jnp.float32)
    type_emb = 0.02 * jax.random.normal(k_t, (type_vocab_size, hidden_size), jnp.float32)
    gamma = jnp.ones((hidden_size,), jnp.float32)
    beta = jnp.zeros((hidden_size,), jnp.float32)

    input_ids = jax.random.randint(k_ids, (B, S), 0, vocab_size, dtype=jnp.int32)

    # ---- Test 1: default token_type_ids / position_ids (resident fast path) ----
    out = quasar_embeddings(input_ids, word_emb, pos_emb, type_emb, gamma, beta,
                            eps=layer_norm_eps)
    out = jax.block_until_ready(out)
    ref = _reference(input_ids, word_emb, pos_emb, type_emb, gamma, beta, layer_norm_eps)
    assert out.shape == (B, S, hidden_size)
    assert jnp.allclose(out, ref, atol=1e-5, rtol=1e-5), "mismatch (default path)"

    # ---- Test 2: explicit token_type_ids / position_ids (resident, in-kernel gathers) ----
    token_type_ids = jax.random.randint(k_tt, (B, S), 0, type_vocab_size, dtype=jnp.int32)
    position_ids = jax.random.randint(k_pos, (B, S), 0, max_position_embeddings, dtype=jnp.int32)
    out2 = quasar_embeddings(input_ids, word_emb, pos_emb, type_emb, gamma, beta,
                             token_type_ids=token_type_ids, position_ids=position_ids,
                             eps=layer_norm_eps)
    out2 = jax.block_until_ready(out2)
    ref2 = _reference(input_ids, word_emb, pos_emb, type_emb, gamma, beta, layer_norm_eps,
                      token_type_ids=token_type_ids, position_ids=position_ids)
    assert jnp.allclose(out2, ref2, atol=1e-5, rtol=1e-5), "mismatch (explicit ids)"

    # ---- Test 3: large-vocab path forced (HBM word table, cross-step DMA gather) ----
    out3 = quasar_embeddings(input_ids, word_emb, pos_emb, type_emb, gamma, beta,
                             eps=layer_norm_eps, word_table_resident=False)
    out3 = jax.block_until_ready(out3)
    assert jnp.allclose(out3, ref, atol=1e-5, rtol=1e-5), "mismatch (HBM gather path)"

    print("KERNEL_OK")
</pallas_src>

<mosaic_0001>
module attributes {stable_mosaic.version = 11 : i64} {
  func.func @_emb_kernel_resident(%arg0: i32, %arg1: memref<8x1xi32, #tpu.memory_space<vmem>>, %arg2: memref<32x128xf32, #tpu.memory_space<vmem>>, %arg3: memref<8x128xf32, #tpu.memory_space<vmem>>, %arg4: memref<2x128xf32, #tpu.memory_space<vmem>>, %arg5: memref<1x128xf32, #tpu.memory_space<vmem>>, %arg6: memref<1x128xf32, #tpu.memory_space<vmem>>, %arg7: memref<8x128xf32, #tpu.memory_space<vmem>>) attributes {dimension_semantics = [#tpu.dimension_semantics<parallel>], iteration_bounds = array<i64: 2>, scalar_prefetch = 0 : i64, scratch_operands = 0 : i64, tpu.core_type = #tpu.core_type<tc>, window_params = [{transform_indices = @transform_0, window_bounds = array<i64: 8, 1>}, {pipeline_mode = #tpu.pipeline_mode<synchronous>, transform_indices = @transform_1, window_bounds = array<i64: 32, 128>}, {transform_indices = @transform_2, window_bounds = array<i64: 8, 128>}, {pipeline_mode = #tpu.pipeline_mode<synchronous>, transform_indices = @transform_3, window_bounds = array<i64: 2, 128>}, {pipeline_mode = #tpu.pipeline_mode<synchronous>, transform_indices = @transform_4, window_bounds = array<i64: 1, 128>}, {pipeline_mode = #tpu.pipeline_mode<synchronous>, transform_indices = @transform_5, window_bounds = array<i64: 1, 128>}, {transform_indices = @transform_6, window_bounds = array<i64: 8, 128>}]} {
    %c0 = arith.constant 0 : index
    %c0_0 = arith.constant 0 : index
    %0 = vector.load %arg1[%c0, %c0_0] : memref<8x1xi32, #tpu.memory_space<vmem>>, vector<8x1xi32>
    %c0_1 = arith.constant 0 : index
    %c0_2 = arith.constant 0 : index
    %1 = vector.load %arg2[%c0_1, %c0_2] : memref<32x128xf32, #tpu.memory_space<vmem>>, vector<32x128xf32>
    %2 = tpu.iota {dimensions = array<i32: 1>} : vector<8x32xi32>
    %3 = vector.broadcast %0 : vector<8x1xi32> to vector<8x32xi32>
    %4 = arith.cmpi eq, %3, %2 : vector<8x32xi32>
    %5 = arith.extui %4 : vector<8x32xi1> to vector<8x32xi32>
    %6 = arith.sitofp %5 : vector<8x32xi32> to vector<8x32xf32>
    %cst = arith.constant dense<0.000000e+00> : vector<8x128xf32>
    %7 = tpu.matmul %6, %1, %cst {dimension_numbers = #tpu.dot_dimension_numbers<[1], [0], [0], [1], [0, 0, 1, 1], [], []>, precision = #tpu.contract_precision<fp32>} : vector<8x32xf32>, vector<32x128xf32>, vector<8x128xf32> -> vector<8x128xf32>
    %c0_3 = arith.constant 0 : index
    %c0_4 = arith.constant 0 : index
    %8 = vector.load %arg3[%c0_3, %c0_4] : memref<8x128xf32, #tpu.memory_space<vmem>>, vector<8x128xf32>
    %c0_5 = arith.constant 0 : index
    %c0_6 = arith.constant 0 : index
    %9 = vector.load %arg4[%c0_5, %c0_6] : memref<2x128xf32, #tpu.memory_space<vmem>>, vector<2x128xf32>
    %10 = vector.extract_strided_slice %9 {offsets = [0, 0], sizes = [1, 128], strides = [1, 1]} : vector<2x128xf32> to vector<1x128xf32>
    %11 = vector.broadcast %10 : vector<1x128xf32> to vector<8x128xf32>
    %12 = arith.addf %8, %11 : vector<8x128xf32>
    %13 = arith.addf %7, %12 : vector<8x128xf32>
    %cst_7 = arith.constant dense<0.000000e+00> : vector<8xf32>
    %14 = vector.multi_reduction <add>, %13, %cst_7 [1] : vector<8x128xf32> to vector<8xf32>
    %15 = vector.shape_cast %14 : vector<8xf32> to vector<8x1xf32>
    %cst_8 = arith.constant 1.280000e+02 : f32
    %16 = vector.broadcast %cst_8 : f32 to vector<8x1xf32>
    %17 = arith.divf %15, %16 : vector<8x1xf32>
    %18 = vector.broadcast %17 : vector<8x1xf32> to vector<8x128xf32>
    %19 = arith.subf %13, %18 : vector<8x128xf32>
    %20 = arith.mulf %19, %19 : vector<8x128xf32>
    %cst_9 = arith.constant dense<0.000000e+00> : vector<8xf32>
    %21 = vector.multi_reduction <add>, %20, %cst_9 [1] : vector<8x128xf32> to vector<8xf32>
    %22 = vector.shape_cast %21 : vector<8xf32> to vector<8x1xf32>
    %cst_10 = arith.constant 1.280000e+02 : f32
    %23 = vector.broadcast %cst_10 : f32 to vector<8x1xf32>
    %24 = arith.divf %22, %23 : vector<8x1xf32>
    %cst_11 = arith.constant 9.99999996E-13 : f32
    %25 = vector.broadcast %cst_11 : f32 to vector<8x1xf32>
    %26 = arith.addf %24, %25 : vector<8x1xf32>
    %27 = math.rsqrt %26 : vector<8x1xf32>
    %28 = vector.broadcast %27 : vector<8x1xf32> to vector<8x128xf32>
    %29 = arith.mulf %19, %28 : vector<8x128xf32>
    %c0_12 = arith.constant 0 : index
    %c0_13 = arith.constant 0 : index
    %30 = vector.load %arg5[%c0_12, %c0_13] : memref<1x128xf32, #tpu.memory_space<vmem>>, vector<1x128xf32>
    %31 = vector.broadcast %30 : vector<1x128xf32> to vector<8x128xf32>
    %32 = arith.mulf %29, %31 : vector<8x128xf32>
    %c0_14 = arith.constant 0 : index
    %c0_15 = arith.constant 0 : index
    %33 = vector.load %arg6[%c0_14, %c0_15] : memref<1x128xf32, #tpu.memory_space<vmem>>, vector<1x128xf32>
    %34 = vector.broadcast %33 : vector<1x128xf32> to vector<8x128xf32>
    %35 = arith.addf %32, %34 : vector<8x128xf32>
    %c0_16 = arith.constant 0 : index
    %c0_17 = arith.constant 0 : index
    %36 = vector.load %arg7[%c0_16, %c0_17] : memref<8x128xf32, #tpu.memory_space<vmem>>, vector<8x128xf32>
    tpu.vector_store %arg7[%c0_16, %c0_17], %35 {strides = array<i32>} : memref<8x128xf32, #tpu.memory_space<vmem>>, vector<8x128xf32>,
    return
  }
  func.func @transform_0(%arg0: i32) -> (i32, i32) {
    %c0_i32 = arith.constant 0 : i32
    %c0_i32_0 = arith.constant 0 : i32
    return %arg0, %c0_i32 : i32, i32
  }
  func.func @transform_1(%arg0: i32) -> (i32, i32) {
    %c0_i32 = arith.constant 0 : i32
    %c0_i32_0 = arith.constant 0 : i32
    %c0_i32_1 = arith.constant 0 : i32
    return %c0_i32, %c0_i32_0 : i32, i32
  }
  func.func @transform_2(%arg0: i32) -> (i32, i32) {
    %c1_i32 = arith.constant 1 : i32
    %c0_i32 = arith.constant 0 : i32
    %0 = arith.cmpi eq, %c1_i32, %c0_i32 : i32
    %c1_i32_0 = arith.constant 1 : i32
    %1 = arith.select %0, %c1_i32_0, %c1_i32 : i32
    %2 = arith.remsi %arg0, %1 : i32
    %c0_i32_1 = arith.constant 0 : i32
    %3 = arith.cmpi ne, %2, %c0_i32_1 : i32
    %c0_i32_2 = arith.constant 0 : i32
    %4 = arith.cmpi slt, %2, %c0_i32_2 : i32
    %c0_i32_3 = arith.constant 0 : i32
    %5 = arith.cmpi slt, %1, %c0_i32_3 : i32
    %6 = arith.xori %4, %5 : i1
    %7 = arith.andi %6, %3 : i1
    %8 = arith.addi %2, %1 : i32
    %9 = arith.select %7, %8, %2 : i32
    %c0_i32_4 = arith.constant 0 : i32
    %c0_i32_5 = arith.constant 0 : i32
    return %9, %c0_i32_4 : i32, i32
  }
  func.func @transform_3(%arg0: i32) -> (i32, i32) {
    %c0_i32 = arith.constant 0 : i32
    %c0_i32_0 = arith.constant 0 : i32
    %c0_i32_1 = arith.constant 0 : i32
    return %c0_i32, %c0_i32_0 : i32, i32
  }
  func.func @transform_4(%arg0: i32) -> (i32, i32) {
    %c0_i32 = arith.constant 0 : i32
    %c0_i32_0 = arith.constant 0 : i32
    %c0_i32_1 = arith.constant 0 : i32
    return %c0_i32, %c0_i32_0 : i32, i32
  }
  func.func @transform_5(%arg0: i32) -> (i32, i32) {
    %c0_i32 = arith.constant 0 : i32
    %c0_i32_0 = arith.constant 0 : i32
    %c0_i32_1 = arith.constant 0 : i32
    return %c0_i32, %c0_i32_0 : i32, i32
  }
  func.func @transform_6(%arg0: i32) -> (i32, i32) {
    %c0_i32 = arith.constant 0 : i32
    %c0_i32_0 = arith.constant 0 : i32
    return %arg0, %c0_i32 : i32, i32
  }
}

</mosaic_0001>

<llo_original>
// kernel: tpu_custom_call.1
$region0: #{tpu_custom_call.1}
  #allocation0 [shape = 'u32[]', space=smem, size = 0x4, offset = 0x4, fixed_abs, tag = 'smem constant byte address 0x4 - core index']
  #allocation1 [shape = 'u32[144,128]{1,0:T(1,128)}', space=vmem, size = 0x12000, scoped, tag = 'internal scratch']
  %s0 = inlined_call_operand.vmem [shape: s32[16,1], index: 0, kind: input, shape index: {}]
  %s1 = inlined_call_operand.hbm [shape: f32[32,128], index: 1, kind: input, shape index: {}]
  %s2 = inlined_call_operand.vmem [shape: f32[16,128], index: 2, kind: input, shape index: {}]
  %s3 = inlined_call_operand.vmem [shape: f32[2,128], index: 3, kind: input, shape index: {}]
  %s4 = inlined_call_operand.vmem [shape: f32[1,128], index: 4, kind: input, shape index: {}]
  %s5 = inlined_call_operand.vmem [shape: f32[1,128], index: 5, kind: input, shape index: {}]
  %s6 = inlined_call_operand.hbm [shape: f32[16,128], index: 6, kind: output, shape index: {}]
  %s7 = sld [smem:[#allocation0]]
  $region61: #{tpu_custom_call.1} parent=0
    _
  %s9 = ssub.s32 1, %s7
  %s10 = scalar_select 0, %s9, %s7
  $region1: #{tpu_custom_call.1} parent=0
    #allocation2 [shape = 'u8[16384]{0}', space=vmem, size = 0x4000, scoped, tag = 'input window, operand 1, single buffered']
    #allocation3 [shape = 's32[2]{0}', space=sflag, size = 0x8, scoped, tag = 'scoped memory for tpu_custom_call.1']
    #allocation4 [shape = 's32[2]{0}', space=sflag, size = 0x8, scoped, tag = 'scoped memory for tpu_custom_call.1']
    #allocation5 [shape = 'u8[8192]{0}', space=vmem, size = 0x2000, scoped, tag = 'output window, operand 0']
    %11 = vsyncpa [#allocation3], 0
    %12 = vsyncpa [#allocation4], 0
    %s13 = scalar_lea.sflag [#allocation4], 1
    %14 = vsyncpa %s13, 0
    loop: start=0, step=1, limit=4
    $region2: #{tpu_custom_call.1} parent=1 // loop_pre_header
      _
    $region3: #{tpu_custom_call.1} parent=1 // loop_header
      %s16 = sphi 0, %s20
      %p17 = scmp.ge.s32.totalorder %s16, 4
      %s26 = sphi 0, %s28
      %s29 = sphi 0, %s26
      %s30 = sphi 0, %s29
      %s46 = sphi 0, %s30
      %s50 = sphi 0, %s50
      %s52 = sphi 0, %s50
      %s53 = sphi 0, %s52
      %s67 = sphi 0, %s53
      %s71 = sphi 0, %s71
      %s73 = sphi 0, %s71
      %s74 = sphi 0, %s73
      %s88 = sphi 0, %s74
      %s92 = sphi 0, %s92
      %s94 = sphi 0, %s92
      %s95 = sphi 0, %s94
      %s109 = sphi 0, %s95
      %s113 = sphi 0, %s113
      %s115 = sphi 0, %s113
      %s116 = sphi 0, %s115
      %s130 = sphi 0, %s116
      %s134 = sphi 0, %s134
      %s136 = sphi 0, %s134
      %s137 = sphi 0, %s136
      %s151 = sphi 0, %s137
      %s157 = sphi 0, %s159
      %s160 = sphi 0, %s157
      %s161 = sphi 0, %s160
      %s177 = sphi 0, %s161
    $region4: #{tpu_custom_call.1} parent=1 // loop_header_branch
      %19 = sbr.rel (%p17) target = $region8
    $region5: #{tpu_custom_call.1} parent=1 // loop_body
      %s21 = ssub.s32 %s16, 1
      %s22 = ssub.s32 %s16, 2
      %s23 = sadd.s32 %s16, 1
      %s24 = ssub.s32 %s16, %s23
      %p25 = scmp.eq.s32.totalorder %s24, 0
      %s27 = sadd.s32 %s26, 1
      %s28 = scalar_select %p25, %s26, %s27
      %p31 = pneg %p25
      %p32 = scmp.eq.s32.totalorder %s16, 1
      %p33 = por %p31, %p32
      %p34 = scmp.ne.s32.totalorder %s26, %s29
      %p35 = scmp.eq.s32.totalorder %s16, 0
      %p36 = por %p34, %p35
      %p37 = scmp.ne.s32.totalorder %s26, %s29
      %p38 = scmp.eq.s32.totalorder %s21, 1
      %p39 = por %p37, %p38
      %p40 = scmp.ne.s32.totalorder %s29, %s30
      %p41 = scmp.eq.s32.totalorder %s21, 0
      %p42 = por %p40, %p41
      %p43 = scmp.ne.s32.totalorder %s29, %s30
      %p44 = scmp.eq.s32.totalorder %s22, 1
      %p45 = por %p43, %p44
      %p47 = scmp.ne.s32.totalorder %s30, %s46
      %p48 = scmp.eq.s32.totalorder %s22, 0
      %p49 = por %p47, %p48
      %s51 = sadd.s32 %s50, 1
      %p54 = scmp.eq.s32.totalorder %s16, 1
      %p55 = scmp.ne.s32.totalorder %s50, %s52
      %p56 = scmp.eq.s32.totalorder %s16, 0
      %p57 = por %p55, %p56
      %p58 = scmp.ne.s32.totalorder %s50, %s52
      %p59 = scmp.eq.s32.totalorder %s21, 1
      %p60 = por %p58, %p59
      %p61 = scmp.ne.s32.totalorder %s52, %s53
      %p62 = scmp.eq.s32.totalorder %s21, 0
      %p63 = por %p61, %p62
      %p64 = scmp.ne.s32.totalorder %s52, %s53
      %p65 = scmp.eq.s32.totalorder %s22, 1
      %p66 = por %p64, %p65
      %p68 = scmp.ne.s32.totalorder %s53, %s67
      %p69 = scmp.eq.s32.totalorder %s22, 0
      %p70 = por %p68, %p69
      %s72 = sadd.s32 %s71, 1
      %p75 = scmp.eq.s32.totalorder %s16, 1
      %p76 = scmp.ne.s32.totalorder %s71, %s73
      %p77 = scmp.eq.s32.totalorder %s16, 0
      %p78 = por %p76, %p77
      %p79 = scmp.ne.s32.totalorder %s71, %s73
      %p80 = scmp.eq.s32.totalorder %s21, 1
      %p81 = por %p79, %p80
      %p82 = scmp.ne.s32.totalorder %s73, %s74
      %p83 = scmp.eq.s32.totalorder %s21, 0
      %p84 = por %p82, %p83
      %p85 = scmp.ne.s32.totalorder %s73, %s74
      %p86 = scmp.eq.s32.totalorder %s22, 1
      %p87 = por %p85, %p86
      %p89 = scmp.ne.s32.totalorder %s74, %s88
      %p90 = scmp.eq.s32.totalorder %s22, 0
      %p91 = por %p89, %p90
      %s93 = sadd.s32 %s92, 1
      %p96 = scmp.eq.s32.totalorder %s16, 1
      %p97 = scmp.ne.s32.totalorder %s92, %s94
      %p98 = scmp.eq.s32.totalorder %s16, 0
      %p99 = por %p97, %p98
      %p100 = scmp.ne.s32.totalorder %s92, %s94
      %p101 = scmp.eq.s32.totalorder %s21, 1
      %p102 = por %p100, %p101
      %p103 = scmp.ne.s32.totalorder %s94, %s95
      %p104 = scmp.eq.s32.totalorder %s21, 0
      %p105 = por %p103, %p104
      %p106 = scmp.ne.s32.totalorder %s94, %s95
      %p107 = scmp.eq.s32.totalorder %s22, 1
      %p108 = por %p106, %p107
      %p110 = scmp.ne.s32.totalorder %s95, %s109
      %p111 = scmp.eq.s32.totalorder %s22, 0
      %p112 = por %p110, %p111
      %s114 = sadd.s32 %s113, 1
      %p117 = scmp.eq.s32.totalorder %s16, 1
      %p118 = scmp.ne.s32.totalorder %s113, %s115
      %p119 = scmp.eq.s32.totalorder %s16, 0
      %p120 = por %p118, %p119
      %p121 = scmp.ne.s32.totalorder %s113, %s115
      %p122 = scmp.eq.s32.totalorder %s21, 1
      %p123 = por %p121, %p122
      %p124 = scmp.ne.s32.totalorder %s115, %s116
      %p125 = scmp.eq.s32.totalorder %s21, 0
      %p126 = por %p124, %p125
      %p127 = scmp.ne.s32.totalorder %s115, %s116
      %p128 = scmp.eq.s32.totalorder %s22, 1
      %p129 = por %p127, %p128
      %p131 = scmp.ne.s32.totalorder %s116, %s130
      %p132 = scmp.eq.s32.totalorder %s22, 0
      %p133 = por %p131, %p132
      %s135 = sadd.s32 %s134, 1
      %p138 = scmp.eq.s32.totalorder %s16, 1
      %p139 = scmp.ne.s32.totalorder %s134, %s136
      %p140 = scmp.eq.s32.totalorder %s16, 0
      %p141 = por %p139, %p140
      %p142 = scmp.ne.s32.totalorder %s134, %s136
      %p143 = scmp.eq.s32.totalorder %s21, 1
      %p144 = por %p142, %p143
      %p145 = scmp.ne.s32.totalorder %s136, %s137
      %p146 = scmp.eq.s32.totalorder %s21, 0
      %p147 = por %p145, %p146
      %p148 = scmp.ne.s32.totalorder %s136, %s137
      %p149 = scmp.eq.s32.totalorder %s22, 1
      %p150 = por %p148, %p149
      %p152 = scmp.ne.s32.totalorder %s137, %s151
      %p153 = scmp.eq.s32.totalorder %s22, 0
      %p154 = por %p152, %p153
      %s155 = ssub.s32 %s16, %s23
      %p156 = scmp.eq.s32.totalorder %s155, 0
      %s158 = sadd.s32 %s157, 1
      %s159 = scalar_select %p156, %s157, %s158
      %p162 = pneg %p156
      %p163 = scmp.eq.s32.totalorder %s16, 1
      %p164 = por %p162, %p163
      %p165 = scmp.ne.s32.totalorder %s157, %s160
      %p166 = scmp.eq.s32.totalorder %s16, 0
      %p167 = por %p165, %p166
      %p168 = scmp.ne.s32.totalorder %s157, %s160
      %p169 = scmp.eq.s32.totalorder %s21, 1
      %p170 = por %p168, %p169
      %p171 = scmp.ne.s32.totalorder %s160, %s161
      %p172 = scmp.eq.s32.totalorder %s21, 0
      %p173 = por %p171, %p172
      %p174 = scmp.ne.s32.totalorder %s160, %s161
      %p175 = scmp.eq.s32.totalorder %s22, 1
      %p176 = por %p174, %p175
      %p178 = scmp.ne.s32.totalorder %s161, %s177
      %p179 = scmp.eq.s32.totalorder %s22, 0
      %p180 = por %p178, %p179
      %p181 = scmp.le.s32.totalorder 1, %s16
      %p182 = scmp.lt.s32.totalorder %s16, 3
      %p183 = pnand %p181, %p182
      %p184 = pneg %p183
      // Predicated region
      $region9: #{tpu_custom_call.1} parent=5 // pred_check
        _
      $region10: #{tpu_custom_call.1} parent=5 // pred_check_branch
        %186 = sbr.rel (%p183) target = $region12
      $region11: #{tpu_custom_call.1} parent=5 // pred_region
        %s187 = ssub.s32 %s16, 1
        // Predicated region
        $region13: #{tpu_custom_call.1} parent=11 // pred_check
          %p188 = pneg %p63
        $region14: #{tpu_custom_call.1} parent=11 // pred_check_branch
          %190 = sbr.rel (%p188) target = $region16
        $region15: #{tpu_custom_call.1} parent=11 // pred_region
          %s192 = ssub.s32 512, 512
          %193 = vsyncadd [#allocation3], %s192
          %s194 = sshll.u32 [#allocation2], 4
          %s195 = int_to_ptr.vmem [resolvable:$true] %s194
          %200 = dma.hbm_to_vmem [thread:$0]  %s1, 512, %s195, [#allocation3], 128, 128, 8
        $region16: #{tpu_custom_call.1} parent=11 // pred_fallthru
          _
        // Predicated region
        $region17: #{tpu_custom_call.1} parent=11 // pred_check
          %p201 = pneg %p84
        $region18: #{tpu_custom_call.1} parent=11 // pred_check_branch
          %203 = sbr.rel (%p201) target = $region20
        $region19: #{tpu_custom_call.1} parent=11 // pred_region
          _
        $region20: #{tpu_custom_call.1} parent=11 // pred_fallthru
          _
        // Predicated region
        $region21: #{tpu_custom_call.1} parent=11 // pred_check
          %p204 = pneg %p105
        $region22: #{tpu_custom_call.1} parent=11 // pred_check_branch
          %206 = sbr.rel (%p204) target = $region24
        $region23: #{tpu_custom_call.1} parent=11 // pred_region
          _
        $region24: #{tpu_custom_call.1} parent=11 // pred_fallthru
          _
        // Predicated region
        $region25: #{tpu_custom_call.1} parent=11 // pred_check
          %p207 = pneg %p126
        $region26: #{tpu_custom_call.1} parent=11 // pred_check_branch
          %209 = sbr.rel (%p207) target = $region28
        $region27: #{tpu_custom_call.1} parent=11 // pred_region
          _
        $region28: #{tpu_custom_call.1} parent=11 // pred_fallthru
          _
        // Predicated region
        $region29: #{tpu_custom_call.1} parent=11 // pred_check
          %p210 = pneg %p147
        $region30: #{tpu_custom_call.1} parent=11 // pred_check_branch
          %212 = sbr.rel (%p210) target = $region32
        $region31: #{tpu_custom_call.1} parent=11 // pred_region
          _
        $region32: #{tpu_custom_call.1} parent=11 // pred_fallthru
          _
      $region12: #{tpu_custom_call.1} parent=5 // pred_fallthru
        _
      %p213 = scmp.lt.s32.totalorder %s16, 2
      // Predicated region
      $region33: #{tpu_custom_call.1} parent=5 // pred_check
        %p214 = pneg %p213
      $region34: #{tpu_custom_call.1} parent=5 // pred_check_branch
        %216 = sbr.rel (%p214) target = $region36
      $region35: #{tpu_custom_call.1} parent=5 // pred_region
        // Predicated region
        $region37: #{tpu_custom_call.1} parent=35 // pred_check
          %p217 = pneg %p36
        $region38: #{tpu_custom_call.1} parent=35 // pred_check_branch
          %219 = sbr.rel (%p217) target = $region40
        $region39: #{tpu_custom_call.1} parent=35 // pred_region
          %p220 = scmp.lt.s32.totalorder %s16, 1
          %s221 = scalar_select %p220, %s16, 1
          %s222 = smul.addr %s221, 8
          %s223 = scalar_lea.vmem %s0, %s222
        $region40: #{tpu_custom_call.1} parent=35 // pred_fallthru
          _
      $region36: #{tpu_custom_call.1} parent=5 // pred_fallthru
        _
      %p224 = scmp.le.s32.totalorder 1, %s16
      %p225 = scmp.lt.s32.totalorder %s16, 3
      %p226 = pnand %p224, %p225
      %p227 = pneg %p226
      // Predicated region
      $region41: #{tpu_custom_call.1} parent=5 // pred_check
        _
      $region42: #{tpu_custom_call.1} parent=5 // pred_check_branch
        %229 = sbr.rel (%p226) target = $region44
      $region43: #{tpu_custom_call.1} parent=5 // pred_region
        %s230 = ssub.s32 %s16, 1
        // Predicated region
        $region45: #{tpu_custom_call.1} parent=43 // pred_check
          %p231 = pneg %p63
        $region46: #{tpu_custom_call.1} parent=43 // pred_check_branch
          %233 = sbr.rel (%p231) target = $region48
        $region47: #{tpu_custom_call.1} parent=43 // pred_region
          %234 = dma.done [#allocation3], 512
        $region48: #{tpu_custom_call.1} parent=43 // pred_fallthru
          _
        %p235 = scmp.lt.s32.totalorder %s21, 1
        %s236 = scalar_select %p235, %s21, 1
        %s237 = smul.addr %s236, 8
        %s238 = scalar_lea.vmem %s0, %s237
        %p239 = pneg %p42
        %p240 = pneg %p39
        %p241 = pneg %p63
        %p242 = pneg %p60
        %p243 = pneg %p84
        %p244 = pneg %p81
        %p245 = pneg %p105
        %p246 = pneg %p102
        %p247 = pneg %p126
        %p248 = pneg %p123
        %p249 = pneg %p147
        %p250 = pneg %p144
        %p251 = pneg %p173
        %p252 = pneg %p170
        %s253 = sand.u32 %s160, 1
        %s254 = scalar_lea.sflag [#allocation4], %s253
        %s255 = sand.u32 %s160, 1
        %s256 = smul.addr %s255, 8
        %s257 = scalar_lea.vmem [#allocation5], %s256
        %p258 = scmp.lt.s32.totalorder %s21, 1
        %s259 = scalar_select %p258, %s21, 1
        %s260 = smul.addr %s259, 8
        %s261 = scalar_lea.vmem %s0, %s260
        %v262 = vld [vmem:[%s261] sm:$0xff]
        %v263 = vld [vmem:[#allocation2] sm:$0xff]
        %v264 = vld [vmem:[#allocation2 + $0x8] sm:$0xff]
        %v265 = vld [vmem:[#allocation2 + $0x10] sm:$0xff]
        %v266 = vld [vmem:[#allocation2 + $0x18] sm:$0xff]
        %v267 = vlaneseq
        %v268 = vand.u32 %v267, 127
        %269 = vset.pattern.permute.xlu0 0
        %270 = vperm.xlu0 %269, %v262
        %v271 = vpop.permute.xlu0 %270
        %vm272 = vcmp.eq.s32.totalorder %v271, %v268
        %v273 = vsel %vm272, 1, 0
        %v274 = vcvt.s32.f32 %v273
        %v275 = vld [vmem:[%s2] sm:$0xff]
        %v276 = vld [vmem:[%s3] sm:$0x3]
        %v277 = vlaneseq
        %v278 = vshrl.u32 %v277, 7
        %v279 = vsub.s32 0, %v278
        %v280 = vrot.slane %v276, %v279
        %v281 = vadd.f32 %v275, %v280
        %vm282 = vcmask 261120
        %v284 = vsel %vm282, %v274, 0
        %286 = vmatprep.subr.mxu0 0.0
        %v287 = vand.u32 %v263, 4294901760
        %288 = vmatpush1.msra.mxu0 %v287
        %289 = vmatprep.subr.mxu0 0.0
        %v290 = vand.u32 %v264, 4294901760
        %291 = vmatpush1.msra.mxu0 %v290
        %292 = vmatprep.subr.mxu0 0.0
        %v293 = vand.u32 %v265, 4294901760
        %294 = vmatpush1.msra.mxu0 %v293
        %295 = vmatprep.subr.mxu0 0.0
        %v296 = vand.u32 %v266, 4294901760
        %297 = vmatpush1.msra.mxu0 %v296
        %298 = vmatprep.subr.mxu0 0.0
        %299 = vmatpush1.msra.mxu0 0.0
        %300 = vmatprep.subr.mxu0 0.0
        %301 = vmatpush1.msra.mxu0 0.0
        %302 = vmatprep.subr.mxu0 0.0
        %303 = vmatpush1.msra.mxu0 0.0
        %304 = vmatprep.subr.mxu0 0.0
        %305 = vmatpush1.msra.mxu0 0.0
        %306 = vmatprep.subr.mxu0 0.0
        %307 = vmatpush1.msra.mxu0 0.0
        %308 = vmatprep.subr.mxu0 0.0
        %309 = vmatpush1.msra.mxu0 0.0
        %310 = vmatprep.subr.mxu0 0.0
        %311 = vmatpush1.msra.mxu0 0.0
        %312 = vmatprep.subr.mxu0 0.0
        %313 = vmatpush1.msra.mxu0 0.0
        %314 = vmatprep.subr.mxu0 0.0
        %315 = vmatpush1.msra.mxu0 0.0
        %316 = vmatprep.subr.mxu0 0.0
        %317 = vmatpush1.msra.mxu0 0.0
        %318 = vmatprep.subr.mxu0 0.0
        %319 = vmatpush1.msra.mxu0 0.0
        %320 = vmatprep.subr.mxu0 0.0
        %321 = vmatpush1.msra.mxu0 0.0
        %322 = vmatprep.subr.mxu0 0.0
        %323 = vmatpush1.msra.mxu0 0.0
        %324 = vmatprep.subr.mxu0 0.0
        %325 = vmatpush1.msra.mxu0 0.0
        %326 = vmatprep.subr.mxu0 0.0
        %327 = vmatpush1.msra.mxu0 0.0
        %328 = vmatprep.subr.mxu0 0.0
        %329 = vmatpush1.msra.mxu0 0.0
        %330 = vmatprep.subr.mxu0 0.0
        %331 = vmatpush1.msra.mxu0 0.0
        %332 = vmatprep.subr.mxu0 0.0
        %333 = vmatpush1.msra.mxu0 0.0
        %334 = vmatprep.subr.mxu0 0.0
        %335 = vmatpush1.msra.mxu0 0.0
        %336 = vmatprep.subr.mxu0 0.0
        %337 = vmatpush1.msra.mxu0 0.0
        %338 = vmatprep.subr.mxu0 0.0
        %339 = vmatpush1.msra.mxu0 0.0
        %340 = vmatprep.subr.mxu0 0.0
        %341 = vmatpush1.msra.mxu0 0.0
        %342 = vmatprep.subr.mxu0 0.0
        %343 = vmatpush1.msra.mxu0 0.0
        %344 = vmatprep.subr.mxu0 0.0
        %345 = vmatpush1.msra.mxu0 0.0
        %346 = vmatprep.subr.mxu0 0.0
        %347 = vmatpush1.msra.mxu0 0.0
        %348 = vmatprep.subr.mxu0 0.0
        %349 = vmatpush1.msra.mxu0 0.0
        %350 = vmatprep.subr.mxu0 0.0
        %351 = vmatpush1.msra.mxu0 0.0
        %352 = vmatprep.subr.mxu0 0.0
        %353 = vmatpush1.msra.mxu0 0.0
        %354 = vmatprep.mubr.f32.mxu0 0.0
        %v355 = vand.u32 %v284, 4294901760
        %v356 = vsub.f32 %v284, %v355
        %v357 = vand.u32 %v356, 4294901760
        %v358 = vsub.f32 %v356, %v357
        %v359 = vand.u32 %v358, 4294901760
        %360 = vmatmul.mubr.f32.gmra.mrb[0].mxu0 %v359
        %v361 = vpop.f32.mrb[0].mxu0
        %v362 = vadd.f32 %v281, %v361
        %v363 = vpop.f32.mrb[0].mxu0
        %364 = vdwg.mxu0
        %365 = vmatprep.subr.mxu0 0.0
        %v366 = vand.u32 %v263, 4294901760
        %v367 = vsub.f32 %v263, %v366
        %v368 = vand.u32 %v367, 4294901760
        %v369 = vsub.f32 %v367, %v368
        %v370 = vand.u32 %v369, 4294901760
        %371 = vmatpush1.msra.mxu0 %v370
        %372 = vmatprep.subr.mxu0 0.0
        %v373 = vand.u32 %v264, 4294901760
        %v374 = vsub.f32 %v264, %v373
        %v375 = vand.u32 %v374, 4294901760
        %v376 = vsub.f32 %v374, %v375
        %v377 = vand.u32 %v376, 4294901760
        %378 = vmatpush1.msra.mxu0 %v377
        %379 = vmatprep.subr.mxu0 0.0
        %v380 = vand.u32 %v265, 4294901760
        %v381 = vsub.f32 %v265, %v380
        %v382 = vand.u32 %v381, 4294901760
        %v383 = vsub.f32 %v381, %v382
        %v384 = vand.u32 %v383, 4294901760
        %385 = vmatpush1.msra.mxu0 %v384
        %386 = vmatprep.subr.mxu0 0.0
        %v387 = vand.u32 %v266, 4294901760
        %v388 = vsub.f32 %v266, %v387
        %v389 = vand.u32 %v388, 4294901760
        %v390 = vsub.f32 %v388, %v389
        %v391 = vand.u32 %v390, 4294901760
        %392 = vmatpush1.msra.mxu0 %v391
        %393 = vmatprep.subr.mxu0 0.0
        %394 = vmatpush1.msra.mxu0 0.0
        %395 = vmatprep.subr.mxu0 0.0
        %396 = vmatpush1.msra.mxu0 0.0
        %397 = vmatprep.subr.mxu0 0.0
        %398 = vmatpush1.msra.mxu0 0.0
        %399 = vmatprep.subr.mxu0 0.0
        %400 = vmatpush1.msra.mxu0 0.0
        %401 = vmatprep.subr.mxu0 0.0
        %402 = vmatpush1.msra.mxu0 0.0
        %403 = vmatprep.subr.mxu0 0.0
        %404 = vmatpush1.msra.mxu0 0.0
        %405 = vmatprep.subr.mxu0 0.0
        %406 = vmatpush1.msra.mxu0 0.0
        %407 = vmatprep.subr.mxu0 0.0
        %408 = vmatpush1.msra.mxu0 0.0
        %409 = vmatprep.subr.mxu0 0.0
        %410 = vmatpush1.msra.mxu0 0.0
        %411 = vmatprep.subr.mxu0 0.0
        %412 = vmatpush1.msra.mxu0 0.0
        %413 = vmatprep.subr.mxu0 0.0
        %414 = vmatpush1.msra.mxu0 0.0
        %415 = vmatprep.subr.mxu0 0.0
        %416 = vmatpush1.msra.mxu0 0.0
        %417 = vmatprep.subr.mxu0 0.0
        %418 = vmatpush1.msra.mxu0 0.0
        %419 = vmatprep.subr.mxu0 0.0
        %420 = vmatpush1.msra.mxu0 0.0
        %421 = vmatprep.subr.mxu0 0.0
        %422 = vmatpush1.msra.mxu0 0.0
        %423 = vmatprep.subr.mxu0 0.0
        %424 = vmatpush1.msra.mxu0 0.0
        %425 = vmatprep.subr.mxu0 0.0
        %426 = vmatpush1.msra.mxu0 0.0
        %427 = vmatprep.subr.mxu0 0.0
        %428 = vmatpush1.msra.mxu0 0.0
        %429 = vmatprep.subr.mxu0 0.0
        %430 = vmatpush1.msra.mxu0 0.0
        %431 = vmatprep.subr.mxu0 0.0
        %432 = vmatpush1.msra.mxu0 0.0
        %433 = vmatprep.subr.mxu0 0.0
        %434 = vmatpush1.msra.mxu0 0.0
        %435 = vmatprep.subr.mxu0 0.0
        %436 = vmatpush1.msra.mxu0 0.0
        %437 = vmatprep.subr.mxu0 0.0
        %438 = vmatpush1.msra.mxu0 0.0
        %439 = vmatprep.subr.mxu0 0.0
        %440 = vmatpush1.msra.mxu0 0.0
        %441 = vmatprep.subr.mxu0 0.0
        %442 = vmatpush1.msra.mxu0 0.0
        %443 = vmatprep.subr.mxu0 0.0
        %444 = vmatpush1.msra.mxu0 0.0
        %445 = vmatprep.subr.mxu0 0.0
        %446 = vmatpush1.msra.mxu0 0.0
        %447 = vmatprep.subr.mxu0 0.0
        %448 = vmatpush1.msra.mxu0 0.0
        %449 = vmatprep.mubr.f32.mxu0 0.0
        %v450 = vand.u32 %v284, 4294901760
        %451 = vmatmul.mubr.f32.gmra.mrb[0].mxu0 %v450
        %v452 = vpop.f32.mrb[0].mxu0
        %v453 = vadd.f32 %v362, %v452
        %v454 = vpop.f32.mrb[0].mxu0
        %455 = vdwg.mxu0
        %456 = vmatprep.subr.mxu0 0.0
        %v457 = vand.u32 %v263, 4294901760
        %v458 = vsub.f32 %v263, %v457
        %459 = vmatpush1.msra.mxu0 %v458
        %460 = vmatprep.subr.mxu0 0.0
        %v461 = vand.u32 %v264, 4294901760
        %v462 = vsub.f32 %v264, %v461
        %463 = vmatpush1.msra.mxu0 %v462
        %464 = vmatprep.subr.mxu0 0.0
        %v465 = vand.u32 %v265, 4294901760
        %v466 = vsub.f32 %v265, %v465
        %467 = vmatpush1.msra.mxu0 %v466
        %468 = vmatprep.subr.mxu0 0.0
        %v469 = vand.u32 %v266, 4294901760
        %v470 = vsub.f32 %v266, %v469
        %471 = vmatpush1.msra.mxu0 %v470
        %472 = vmatprep.subr.mxu0 0.0
        %473 = vmatpush1.msra.mxu0 0.0
        %474 = vmatprep.subr.mxu0 0.0
        %475 = vmatpush1.msra.mxu0 0.0
        %476 = vmatprep.subr.mxu0 0.0
        %477 = vmatpush1.msra.mxu0 0.0
        %478 = vmatprep.subr.mxu0 0.0
        %479 = vmatpush1.msra.mxu0 0.0
        %480 = vmatprep.subr.mxu0 0.0
        %481 = vmatpush1.msra.mxu0 0.0
        %482 = vmatprep.subr.mxu0 0.0
        %483 = vmatpush1.msra.mxu0 0.0
        %484 = vmatprep.subr.mxu0 0.0
        %485 = vmatpush1.msra.mxu0 0.0
        %486 = vmatprep.subr.mxu0 0.0
        %487 = vmatpush1.msra.mxu0 0.0
        %488 = vmatprep.subr.mxu0 0.0
        %489 = vmatpush1.msra.mxu0 0.0
        %490 = vmatprep.subr.mxu0 0.0
        %491 = vmatpush1.msra.mxu0 0.0
        %492 = vmatprep.subr.mxu0 0.0
        %493 = vmatpush1.msra.mxu0 0.0
        %494 = vmatprep.subr.mxu0 0.0
        %495 = vmatpush1.msra.mxu0 0.0
        %496 = vmatprep.subr.mxu0 0.0
        %497 = vmatpush1.msra.mxu0 0.0
        %498 = vmatprep.subr.mxu0 0.0
        %499 = vmatpush1.msra.mxu0 0.0
        %500 = vmatprep.subr.mxu0 0.0
        %501 = vmatpush1.msra.mxu0 0.0
        %502 = vmatprep.subr.mxu0 0.0
        %503 = vmatpush1.msra.mxu0 0.0
        %504 = vmatprep.subr.mxu0 0.0
        %505 = vmatpush1.msra.mxu0 0.0
        %506 = vmatprep.subr.mxu0 0.0
        %507 = vmatpush1.msra.mxu0 0.0
        %508 = vmatprep.subr.mxu0 0.0
        %509 = vmatpush1.msra.mxu0 0.0
        %510 = vmatprep.subr.mxu0 0.0
        %511 = vmatpush1.msra.mxu0 0.0
        %512 = vmatprep.subr.mxu0 0.0
        %513 = vmatpush1.msra.mxu0 0.0
        %514 = vmatprep.subr.mxu0 0.0
        %515 = vmatpush1.msra.mxu0 0.0
        %516 = vmatprep.subr.mxu0 0.0
        %517 = vmatpush1.msra.mxu0 0.0
        %518 = vmatprep.subr.mxu0 0.0
        %519 = vmatpush1.msra.mxu0 0.0
        %520 = vmatprep.subr.mxu0 0.0
        %521 = vmatpush1.msra.mxu0 0.0
        %522 = vmatprep.subr.mxu0 0.0
        %523 = vmatpush1.msra.mxu0 0.0
        %524 = vmatprep.subr.mxu0 0.0
        %525 = vmatpush1.msra.mxu0 0.0
        %526 = vmatprep.subr.mxu0 0.0
        %527 = vmatpush1.msra.mxu0 0.0
        %528 = vmatprep.mubr.f32.mxu0 0.0
        %v529 = vand.u32 %v284, 4294901760
        %v530 = vsub.f32 %v284, %v529
        %531 = vmatmul.mubr.f32.gmra.mrb[0].mxu0 %v530
        %v532 = vpop.f32.mrb[0].mxu0
        %v533 = vadd.f32 %v453, %v532
        %v534 = vpop.f32.mrb[0].mxu0
        %535 = vdwg.mxu0
        %536 = vmatprep.subr.mxu0 0.0
        %v537 = vand.u32 %v263, 4294901760
        %538 = vmatpush1.msra.mxu0 %v537
        %539 = vmatprep.subr.mxu0 0.0
        %v540 = vand.u32 %v264, 4294901760
        %541 = vmatpush1.msra.mxu0 %v540
        %542 = vmatprep.subr.mxu0 0.0
        %v543 = vand.u32 %v265, 4294901760
        %544 = vmatpush1.msra.mxu0 %v543
        %545 = vmatprep.subr.mxu0 0.0
        %v546 = vand.u32 %v266, 4294901760
        %547 = vmatpush1.msra.mxu0 %v546
        %548 = vmatprep.subr.mxu0 0.0
        %549 = vmatpush1.msra.mxu0 0.0
        %550 = vmatprep.subr.mxu0 0.0
        %551 = vmatpush1.msra.mxu0 0.0
        %552 = vmatprep.subr.mxu0 0.0
        %553 = vmatpush1.msra.mxu0 0.0
        %554 = vmatprep.subr.mxu0 0.0
        %555 = vmatpush1.msra.mxu0 0.0
        %556 = vmatprep.subr.mxu0 0.0
        %557 = vmatpush1.msra.mxu0 0.0
        %558 = vmatprep.subr.mxu0 0.0
        %559 = vmatpush1.msra.mxu0 0.0
        %560 = vmatprep.subr.mxu0 0.0
        %561 = vmatpush1.msra.mxu0 0.0
        %562 = vmatprep.subr.mxu0 0.0
        %563 = vmatpush1.msra.mxu0 0.0
        %564 = vmatprep.subr.mxu0 0.0
        %565 = vmatpush1.msra.mxu0 0.0
        %566 = vmatprep.subr.mxu0 0.0
        %567 = vmatpush1.msra.mxu0 0.0
        %568 = vmatprep.subr.mxu0 0.0
        %569 = vmatpush1.msra.mxu0 0.0
        %570 = vmatprep.subr.mxu0 0.0
        %571 = vmatpush1.msra.mxu0 0.0
        %572 = vmatprep.subr.mxu0 0.0
        %573 = vmatpush1.msra.mxu0 0.0
        %574 = vmatprep.subr.mxu0 0.0
        %575 = vmatpush1.msra.mxu0 0.0
        %576 = vmatprep.subr.mxu0 0.0
        %577 = vmatpush1.msra.mxu0 0.0
        %578 = vmatprep.subr.mxu0 0.0
        %579 = vmatpush1.msra.mxu0 0.0
        %580 = vmatprep.subr.mxu0 0.0
        %581 = vmatpush1.msra.mxu0 0.0
        %582 = vmatprep.subr.mxu0 0.0
        %583 = vmatpush1.msra.mxu0 0.0
        %584 = vmatprep.subr.mxu0 0.0
        %585 = vmatpush1.msra.mxu0 0.0
        %586 = vmatprep.subr.mxu0 0.0
        %587 = vmatpush1.msra.mxu0 0.0
        %588 = vmatprep.subr.mxu0 0.0
        %589 = vmatpush1.msra.mxu0 0.0
        %590 = vmatprep.subr.mxu0 0.0
        %591 = vmatpush1.msra.mxu0 0.0
        %592 = vmatprep.subr.mxu0 0.0
        %593 = vmatpush1.msra.mxu0 0.0
        %594 = vmatprep.subr.mxu0 0.0
        %595 = vmatpush1.msra.mxu0 0.0
        %596 = vmatprep.subr.mxu0 0.0
        %597 = vmatpush1.msra.mxu0 0.0
        %598 = vmatprep.subr.mxu0 0.0
        %599 = vmatpush1.msra.mxu0 0.0
        %600 = vmatprep.subr.mxu0 0.0
        %601 = vmatpush1.msra.mxu0 0.0
        %602 = vmatprep.subr.mxu0 0.0
        %603 = vmatpush1.msra.mxu0 0.0
        %604 = vmatprep.mubr.f32.mxu0 0.0
        %v605 = vand.u32 %v284, 4294901760
        %v606 = vsub.f32 %v284, %v605
        %v607 = vand.u32 %v606, 4294901760
        %608 = vmatmul.mubr.f32.gmra.mrb[0].mxu0 %v607
        %v609 = vpop.f32.mrb[0].mxu0
        %v610 = vadd.f32 %v533, %v609
        %v611 = vpop.f32.mrb[0].mxu0
        %612 = vdwg.mxu0
        %613 = vmatprep.subr.mxu0 0.0
        %v614 = vand.u32 %v263, 4294901760
        %v615 = vsub.f32 %v263, %v614
        %v616 = vand.u32 %v615, 4294901760
        %617 = vmatpush1.msra.mxu0 %v616
        %618 = vmatprep.subr.mxu0 0.0
        %v619 = vand.u32 %v264, 4294901760
        %v620 = vsub.f32 %v264, %v619
        %v621 = vand.u32 %v620, 4294901760
        %622 = vmatpush1.msra.mxu0 %v621
        %623 = vmatprep.subr.mxu0 0.0
        %v624 = vand.u32 %v265, 4294901760
        %v625 = vsub.f32 %v265, %v624
        %v626 = vand.u32 %v625, 4294901760
        %627 = vmatpush1.msra.mxu0 %v626
        %628 = vmatprep.subr.mxu0 0.0
        %v629 = vand.u32 %v266, 4294901760
        %v630 = vsub.f32 %v266, %v629
        %v631 = vand.u32 %v630, 4294901760
        %632 = vmatpush1.msra.mxu0 %v631
        %633 = vmatprep.subr.mxu0 0.0
        %634 = vmatpush1.msra.mxu0 0.0
        %635 = vmatprep.subr.mxu0 0.0
        %636 = vmatpush1.msra.mxu0 0.0
        %637 = vmatprep.subr.mxu0 0.0
        %638 = vmatpush1.msra.mxu0 0.0
        %639 = vmatprep.subr.mxu0 0.0
        %640 = vmatpush1.msra.mxu0 0.0
        %641 = vmatprep.subr.mxu0 0.0
        %642 = vmatpush1.msra.mxu0 0.0
        %643 = vmatprep.subr.mxu0 0.0
        %644 = vmatpush1.msra.mxu0 0.0
        %645 = vmatprep.subr.mxu0 0.0
        %646 = vmatpush1.msra.mxu0 0.0
        %647 = vmatprep.subr.mxu0 0.0
        %648 = vmatpush1.msra.mxu0 0.0
        %649 = vmatprep.subr.mxu0 0.0
        %650 = vmatpush1.msra.mxu0 0.0
        %651 = vmatprep.subr.mxu0 0.0
        %652 = vmatpush1.msra.mxu0 0.0
        %653 = vmatprep.subr.mxu0 0.0
        %654 = vmatpush1.msra.mxu0 0.0
        %655 = vmatprep.subr.mxu0 0.0
        %656 = vmatpush1.msra.mxu0 0.0
        %657 = vmatprep.subr.mxu0 0.0
        %658 = vmatpush1.msra.mxu0 0.0
        %659 = vmatprep.subr.mxu0 0.0
        %660 = vmatpush1.msra.mxu0 0.0
        %661 = vmatprep.subr.mxu0 0.0
        %662 = vmatpush1.msra.mxu0 0.0
        %663 = vmatprep.subr.mxu0 0.0
        %664 = vmatpush1.msra.mxu0 0.0
        %665 = vmatprep.subr.mxu0 0.0
        %666 = vmatpush1.msra.mxu0 0.0
        %667 = vmatprep.subr.mxu0 0.0
        %668 = vmatpush1.msra.mxu0 0.0
        %669 = vmatprep.subr.mxu0 0.0
        %670 = vmatpush1.msra.mxu0 0.0
        %671 = vmatprep.subr.mxu0 0.0
        %672 = vmatpush1.msra.mxu0 0.0
        %673 = vmatprep.subr.mxu0 0.0
        %674 = vmatpush1.msra.mxu0 0.0
        %675 = vmatprep.subr.mxu0 0.0
        %676 = vmatpush1.msra.mxu0 0.0
        %677 = vmatprep.subr.mxu0 0.0
        %678 = vmatpush1.msra.mxu0 0.0
        %679 = vmatprep.subr.mxu0 0.0
        %680 = vmatpush1.msra.mxu0 0.0
        %681 = vmatprep.subr.mxu0 0.0
        %682 = vmatpush1.msra.mxu0 0.0
        %683 = vmatprep.subr.mxu0 0.0
        %684 = vmatpush1.msra.mxu0 0.0
        %685 = vmatprep.subr.mxu0 0.0
        %686 = vmatpush1.msra.mxu0 0.0
        %687 = vmatprep.subr.mxu0 0.0
        %688 = vmatpush1.msra.mxu0 0.0
        %689 = vmatprep.mubr.f32.mxu0 0.0
        %v690 = vand.u32 %v284, 4294901760
        %691 = vmatmul.mubr.f32.gmra.mrb[0].mxu0 %v690
        %v692 = vpop.f32.mrb[0].mxu0
        %v693 = vadd.f32 %v610, %v692
        %v694 = vpop.f32.mrb[0].mxu0
        %695 = vdwg.mxu0
        %696 = vmatprep.subr.mxu0 0.0
        %v697 = vand.u32 %v263, 4294901760
        %698 = vmatpush1.msra.mxu0 %v697
        %699 = vmatprep.subr.mxu0 0.0
        %v700 = vand.u32 %v264, 4294901760
        %701 = vmatpush1.msra.mxu0 %v700
        %702 = vmatprep.subr.mxu0 0.0
        %v703 = vand.u32 %v265, 4294901760
        %704 = vmatpush1.msra.mxu0 %v703
        %705 = vmatprep.subr.mxu0 0.0
        %v706 = vand.u32 %v266, 4294901760
        %707 = vmatpush1.msra.mxu0 %v706
        %708 = vmatprep.subr.mxu0 0.0
        %709 = vmatpush1.msra.mxu0 0.0
        %710 = vmatprep.subr.mxu0 0.0
        %711 = vmatpush1.msra.mxu0 0.0
        %712 = vmatprep.subr.mxu0 0.0
        %713 = vmatpush1.msra.mxu0 0.0
        %714 = vmatprep.subr.mxu0 0.0
        %715 = vmatpush1.msra.mxu0 0.0
        %716 = vmatprep.subr.mxu0 0.0
        %717 = vmatpush1.msra.mxu0 0.0
        %718 = vmatprep.subr.mxu0 0.0
        %719 = vmatpush1.msra.mxu0 0.0
        %720 = vmatprep.subr.mxu0 0.0
        %721 = vmatpush1.msra.mxu0 0.0
        %722 = vmatprep.subr.mxu0 0.0
        %723 = vmatpush1.msra.mxu0 0.0
        %724 = vmatprep.subr.mxu0 0.0
        %725 = vmatpush1.msra.mxu0 0.0
        %726 = vmatprep.subr.mxu0 0.0
        %727 = vmatpush1.msra.mxu0 0.0
        %728 = vmatprep.subr.mxu0 0.0
        %729 = vmatpush1.msra.mxu0 0.0
        %730 = vmatprep.subr.mxu0 0.0
        %731 = vmatpush1.msra.mxu0 0.0
        %732 = vmatprep.subr.mxu0 0.0
        %733 = vmatpush1.msra.mxu0 0.0
        %734 = vmatprep.subr.mxu0 0.0
        %735 = vmatpush1.msra.mxu0 0.0
        %736 = vmatprep.subr.mxu0 0.0
        %737 = vmatpush1.msra.mxu0 0.0
        %738 = vmatprep.subr.mxu0 0.0
        %739 = vmatpush1.msra.mxu0 0.0
        %740 = vmatprep.subr.mxu0 0.0
        %741 = vmatpush1.msra.mxu0 0.0
        %742 = vmatprep.subr.mxu0 0.0
        %743 = vmatpush1.msra.mxu0 0.0
        %744 = vmatprep.subr.mxu0 0.0
        %745 = vmatpush1.msra.mxu0 0.0
        %746 = vmatprep.subr.mxu0 0.0
        %747 = vmatpush1.msra.mxu0 0.0
        %748 = vmatprep.subr.mxu0 0.0
        %749 = vmatpush1.msra.mxu0 0.0
        %750 = vmatprep.subr.mxu0 0.0
        %751 = vmatpush1.msra.mxu0 0.0
        %752 = vmatprep.subr.mxu0 0.0
        %753 = vmatpush1.msra.mxu0 0.0
        %754 = vmatprep.subr.mxu0 0.0
        %755 = vmatpush1.msra.mxu0 0.0
        %756 = vmatprep.subr.mxu0 0.0
        %757 = vmatpush1.msra.mxu0 0.0
        %758 = vmatprep.subr.mxu0 0.0
        %759 = vmatpush1.msra.mxu0 0.0
        %760 = vmatprep.subr.mxu0 0.0
        %761 = vmatpush1.msra.mxu0 0.0
        %762 = vmatprep.subr.mxu0 0.0
        %763 = vmatpush1.msra.mxu0 0.0
        %764 = vmatprep.mubr.f32.mxu0 0.0
        %v765 = vand.u32 %v284, 4294901760
        %766 = vmatmul.mubr.f32.gmra.mrb[0].mxu0 %v765
        %v767 = vpop.f32.mrb[0].mxu0
        %v768 = vadd.f32 %v693, %v767
        %v769 = vpop.f32.mrb[0].mxu0
        %770 = vdwg.mxu0
        %771 = vadd.xlane.f32.xlu0 %v768
        %v772 = vpop.xlane.xlu0 %771
        %v773 = vrcp.pop 128.0
        %v774 = vmul.f32 %v772, %v773
        %v775 = vsub.f32 %v768, %v774
        %v776 = vmul.f32 %v775, %v775
        %777 = vadd.xlane.f32.xlu0 %v776
        %v778 = vpop.xlane.xlu0 %777
        %v779 = vmul.f32 %v778, %v773
        %v780 = vadd.f32 %v779, 1e-12
        %v781 = vrsqrt.pop %v780
        %v782 = vmul.f32 %v775, %v781
        %v783 = vld [vmem:[%s4] sm:$0x1]
        %v785 = vlaneseq
        %v786 = vshrl.u32 %v785, 7
        %v787 = vsub.s32 0, %v786
        %v788 = vrot.slane %v783, %v787
        %v790 = vmul.f32 %v782, %v788
        %v791 = vld [vmem:[%s5] sm:$0x1]
        %v793 = vlaneseq
        %v794 = vshrl.u32 %v793, 7
        %v795 = vsub.s32 0, %v794
        %v796 = vrot.slane %v791, %v795
        %v798 = vadd.f32 %v790, %v796
        %799 = vst [vmem:[%s257] sm:$0xff] %v798
        %s800 = sand.u32 %s160, 1
        %s801 = scalar_lea.sflag [#allocation4], %s800
        %s802 = sand.u32 %s160, 1
        %s803 = smul.addr %s802, 8
        %s804 = scalar_lea.vmem [#allocation5], %s803
        // Predicated region
        $region49: #{tpu_custom_call.1} parent=43 // pred_check
          %p805 = pneg %p170
        $region50: #{tpu_custom_call.1} parent=43 // pred_check_branch
          %807 = sbr.rel (%p805) target = $region52
        $region51: #{tpu_custom_call.1} parent=43 // pred_region
          %s809 = ssub.s32 128, 128
          %810 = vsyncadd %s801, %s809
          %s811 = smul.addr %s21, 128
          %s812 = scalar_lea.hbm %s6, %s811
          %s814 = sshll.u32 %s804, 4
          %s815 = int_to_ptr.vmem [resolvable:$true] %s814
          %817 = dma.vmem_to_hbm [thread:$0]  %s815, 128, %s812, %s801
        $region52: #{tpu_custom_call.1} parent=43 // pred_fallthru
          _
      $region44: #{tpu_custom_call.1} parent=5 // pred_fallthru
        _
      %p818 = scmp.le.s32.totalorder 2, %s16
      // Predicated region
      $region53: #{tpu_custom_call.1} parent=5 // pred_check
        %p819 = pneg %p818
      $region54: #{tpu_custom_call.1} parent=5 // pred_check_branch
        %821 = sbr.rel (%p819) target = $region56
      $region55: #{tpu_custom_call.1} parent=5 // pred_region
        %s822 = ssub.s32 %s16, 2
        // Predicated region
        $region57: #{tpu_custom_call.1} parent=55 // pred_check
          %p823 = pneg %p176
        $region58: #{tpu_custom_call.1} parent=55 // pred_check_branch
          %825 = sbr.rel (%p823) target = $region60
        $region59: #{tpu_custom_call.1} parent=55 // pred_region
          %s826 = sand.u32 %s161, 1
          %s827 = scalar_lea.sflag [#allocation4], %s826
          %s828 = sand.u32 %s161, 1
          %s829 = smul.addr %s828, 8
          %s830 = scalar_lea.vmem [#allocation5], %s829
          %831 = dma.done %s827, 128
        $region60: #{tpu_custom_call.1} parent=55 // pred_fallthru
          _
      $region56: #{tpu_custom_call.1} parent=5 // pred_fallthru
        _
    $region6: #{tpu_custom_call.1} parent=1 // loop_footer
      %s20 = sadd.s32 1, %s16
    $region7: #{tpu_custom_call.1} parent=1 // loop_footer_branch
      %15 = sbr.rel target = $region3
    $region8: #{tpu_custom_call.1} parent=1 // loop_exit
      _
    %832 = vsyncpa [#allocation3], 1
    %s833 = scalar_lea.sflag [#allocation3], 1
    %834 = vsyncpa %s833, 1
    %835 = vsyncpa [#allocation4], 1
    %s836 = scalar_lea.sflag [#allocation4], 1
    %837 = vsyncpa %s836, 1

</llo_original>
